<compile_context>
chip_gen: v7x
topology: tpu7x:2x2x1
jax: 0.10.0
libtpu: 0.0.40
codegen_flags: <defaults>
</compile_context>

<pallas_src>
import jax
import jax.numpy as jnp
from jax.experimental import pallas as pl
from jax.experimental.pallas import tpu as pltpu


def addmm_stack_kernel(x_ref, wb_ref, o_ref):
    # x_ref : (batch=2, in=2)          VMEM
    # wb_ref: (in+1=3, out=3)          VMEM  rows 0..1 = W^T, row 2 = bias
    # o_ref : (3, batch=2, out=3)      VMEM  stack((y, y, y), 0), y = x @ W^T + b
    x = x_ref[...].astype(jnp.float32)          # upcast once (v5e bf16 guard)
    wb = wb_ref[...].astype(jnp.float32)

    x0 = x[:, 0:1]                              # (2, 1)
    x1 = x[:, 1:2]                              # (2, 1)
    w0 = wb[0:1, :]                             # (1, 3) weights of input feature 0
    w1 = wb[1:2, :]                             # (1, 3) weights of input feature 1
    b = wb[2:3, :]                              # (1, 3) bias row

    # Two VPU broadcast-FMAs instead of an MXU matmul (K=2, M=2).
    y = x0 * w0 + x1 * w1 + b                   # (2, 3)

    # Fold torch.stack((y, y, y), 0) into the single (masked) store.
    o_ref[...] = jnp.broadcast_to(y[None], o_ref.shape).astype(o_ref.dtype)


def prepare_params(weight, bias):
    """One-time parameter packing (per parameter set, NOT per call).

    weight: (out, in) PyTorch layout, bias: (out,) -> (in+1, out) operand
    whose rows 0..in-1 are W^T and whose last row is the bias.
    """
    return jnp.concatenate([weight.T, bias[None, :]], axis=0)


@jax.jit
def forward(x, wb):
    """x: (batch, in_f), wb: (in_f+1, out_f) -> (3, batch, out_f)."""
    batch = x.shape[0]
    out_f = wb.shape[1]
    out_dtype = jnp.promote_types(x.dtype, wb.dtype)

    flops = 3 * batch * out_f * 2 + batch * out_f           # FMAs + bias add
    bytes_accessed = (x.size + wb.size + 3 * batch * out_f) * 4

    return pl.pallas_call(
        addmm_stack_kernel,
        out_shape=jax.ShapeDtypeStruct((3, batch, out_f), out_dtype),
        in_specs=[
            pl.BlockSpec(memory_space=pltpu.MemorySpace.VMEM),
            pl.BlockSpec(memory_space=pltpu.MemorySpace.VMEM),
        ],
        out_specs=pl.BlockSpec(memory_space=pltpu.MemorySpace.VMEM),
        cost_estimate=pl.CostEstimate(
            flops=flops, transcendentals=0, bytes_accessed=bytes_accessed
        ),
    )(x, wb)


if __name__ == "__main__":
    key = jax.random.PRNGKey(0)
    kx, kw, kb = jax.random.split(key, 3)

    # Shapes from nn.Linear(2, 3) and x = torch.randn(2, 2).
    x = jax.random.normal(kx, (2, 2), dtype=jnp.float32)
    weight = jax.random.normal(kw, (3, 2), dtype=jnp.float32) * 0.5  # PyTorch (out, in)
    bias = jax.random.normal(kb, (3,), dtype=jnp.float32) * 0.1

    # One-time parameter prep (outside the per-call path).
    wb = jax.block_until_ready(prepare_params(weight, bias))

    out = forward(x, wb)
    out = jax.block_until_ready(out)

    # Reference for the well-defined portion of the module.
    ref = jnp.stack([x @ weight.T + bias] * 3, axis=0)
    assert out.shape == (3, 2, 3), f"bad shape {out.shape}"
    assert jnp.allclose(out, ref, atol=1e-5), "mismatch vs reference"

    print("KERNEL_OK")
</pallas_src>

<mosaic_0001>
module attributes {stable_mosaic.version = 11 : i64} {
  func.func @addmm_stack_kernel(%arg0: memref<2x2xf32, #tpu.memory_space<vmem>>, %arg1: memref<3x3xf32, #tpu.memory_space<vmem>>, %arg2: memref<3x2x3xf32, #tpu.memory_space<vmem>>) attributes {dimension_semantics = [], scalar_prefetch = 0 : i64, scratch_operands = 0 : i64, tpu.core_type = #tpu.core_type<tc>} {
    %c0 = arith.constant 0 : index
    %c0_0 = arith.constant 0 : index
    %0 = vector.load %arg0[%c0, %c0_0] : memref<2x2xf32, #tpu.memory_space<vmem>>, vector<2x2xf32>
    %c0_1 = arith.constant 0 : index
    %c0_2 = arith.constant 0 : index
    %1 = vector.load %arg1[%c0_1, %c0_2] : memref<3x3xf32, #tpu.memory_space<vmem>>, vector<3x3xf32>
    %2 = vector.extract_strided_slice %0 {offsets = [0, 0], sizes = [2, 1], strides = [1, 1]} : vector<2x2xf32> to vector<2x1xf32>
    %3 = vector.extract_strided_slice %0 {offsets = [0, 1], sizes = [2, 1], strides = [1, 1]} : vector<2x2xf32> to vector<2x1xf32>
    %4 = vector.extract_strided_slice %1 {offsets = [0, 0], sizes = [1, 3], strides = [1, 1]} : vector<3x3xf32> to vector<1x3xf32>
    %5 = vector.extract_strided_slice %1 {offsets = [1, 0], sizes = [1, 3], strides = [1, 1]} : vector<3x3xf32> to vector<1x3xf32>
    %6 = vector.extract_strided_slice %1 {offsets = [2, 0], sizes = [1, 3], strides = [1, 1]} : vector<3x3xf32> to vector<1x3xf32>
    %7 = vector.broadcast %2 : vector<2x1xf32> to vector<2x3xf32>
    %8 = vector.broadcast %4 : vector<1x3xf32> to vector<2x3xf32>
    %9 = arith.mulf %7, %8 : vector<2x3xf32>
    %10 = vector.broadcast %3 : vector<2x1xf32> to vector<2x3xf32>
    %11 = vector.broadcast %5 : vector<1x3xf32> to vector<2x3xf32>
    %12 = arith.mulf %10, %11 : vector<2x3xf32>
    %13 = arith.addf %9, %12 : vector<2x3xf32>
    %14 = vector.broadcast %6 : vector<1x3xf32> to vector<2x3xf32>
    %15 = arith.addf %13, %14 : vector<2x3xf32>
    %16 = vector.shape_cast %15 : vector<2x3xf32> to vector<1x2x3xf32>
    %17 = vector.shape_cast %16 : vector<1x2x3xf32> to vector<1x2x3xf32>
    %18 = vector.broadcast %17 : vector<1x2x3xf32> to vector<3x2x3xf32>
    %c0_3 = arith.constant 0 : index
    %c0_4 = arith.constant 0 : index
    %c0_5 = arith.constant 0 : index
    %19 = vector.load %arg2[%c0_3, %c0_4, %c0_5] : memref<3x2x3xf32, #tpu.memory_space<vmem>>, vector<3x2x3xf32>
    tpu.vector_store %arg2[%c0_3, %c0_4, %c0_5], %18 {strides = array<i32>} : memref<3x2x3xf32, #tpu.memory_space<vmem>>, vector<3x2x3xf32>,
    return
  }
}

</mosaic_0001>

<llo_original>
// kernel: forward.1
$region0: #{forward.1}
  #allocation0 [shape = 'u32[]', space=smem, size = 0x4, offset = 0x4, fixed_abs, tag = 'smem constant byte address 0x4 - core index']
  #allocation1 [shape = 'u32[144,128]{1,0:T(1,128)}', space=vmem, size = 0x12000, scoped, tag = 'internal scratch']
  %s0 = inlined_call_operand.hbm [shape: f32[2,2], index: 0, kind: input, shape index: {}]
  %s1 = inlined_call_operand.hbm [shape: f32[3,3], index: 1, kind: input, shape index: {}]
  %s2 = inlined_call_operand.hbm [shape: f32[3,2,3], index: 2, kind: output, shape index: {}]
  %s3 = sld [smem:[#allocation0]]
  $region26: #{forward.1} parent=0
    _
  %s5 = ssub.s32 1, %s3
  %s6 = scalar_select 0, %s5, %s3
  $region1: #{forward.1} parent=0
    #allocation2 [shape = 'u8[1024]{0}', space=vmem, size = 0x400, scoped, tag = 'input window, operand 0, single buffered']
    #allocation3 [shape = 's32[1]{0}', space=sflag, size = 0x4, scoped, tag = 'scoped memory for forward.1']
    #allocation4 [shape = 's32[1]{0}', space=sflag, size = 0x4, scoped, tag = 'scoped memory for forward.1']
    #allocation5 [shape = 'u8[2048]{0}', space=vmem, size = 0x800, scoped, tag = 'input window, operand 1, single buffered']
    #allocation6 [shape = 's32[1]{0}', space=sflag, size = 0x4, scoped, tag = 'scoped memory for forward.1']
    #allocation7 [shape = 'u8[3072]{0}', space=vmem, size = 0xc00, scoped, tag = 'output window, operand 0, single buffered']
    %7 = vsyncpa [#allocation3], 0
    %8 = vsyncpa [#allocation6], 0
    %9 = vsyncpa [#allocation4], 0
    // Predicated region
    $region2: #{forward.1} parent=1 // pred_check
      _
    $region3: #{forward.1} parent=1 // pred_check_branch
      %11 = sbr.rel (0) target = $region5
    $region4: #{forward.1} parent=1 // pred_region
      %s13 = ssub.s32 32, 32
      %14 = vsyncadd [#allocation3], %s13
      %s16 = sshll.u32 [#allocation2], 4
      %s17 = int_to_ptr.vmem [resolvable:$true] %s16
      %19 = dma.hbm_to_vmem [thread:$0]  %s0, 32, %s17, [#allocation3]
    $region5: #{forward.1} parent=1 // pred_fallthru
      _
    // Predicated region
    $region6: #{forward.1} parent=1 // pred_check
      _
    $region7: #{forward.1} parent=1 // pred_check_branch
      %21 = sbr.rel (0) target = $region9
    $region8: #{forward.1} parent=1 // pred_region
      %s23 = ssub.s32 64, 64
      %24 = vsyncadd [#allocation6], %s23
      %s26 = sshll.u32 [#allocation5], 4
      %s27 = int_to_ptr.vmem [resolvable:$true] %s26
      %29 = dma.hbm_to_vmem [thread:$0]  %s1, 64, %s27, [#allocation6]
    $region9: #{forward.1} parent=1 // pred_fallthru
      _
    // Predicated region
    $region10: #{forward.1} parent=1 // pred_check
      _
    $region11: #{forward.1} parent=1 // pred_check_branch
      %31 = sbr.rel (0) target = $region13
    $region12: #{forward.1} parent=1 // pred_region
      %32 = dma.done [#allocation3], 32
    $region13: #{forward.1} parent=1 // pred_fallthru
      _
    // Predicated region
    $region14: #{forward.1} parent=1 // pred_check
      _
    $region15: #{forward.1} parent=1 // pred_check_branch
      %34 = sbr.rel (0) target = $region17
    $region16: #{forward.1} parent=1 // pred_region
      %35 = dma.done [#allocation6], 64
    $region17: #{forward.1} parent=1 // pred_fallthru
      _
    %v36 = vld [vmem:[#allocation2] sm:$0x3]
    %v37 = vld [vmem:[#allocation5] sm:$0x7]
    %39 = vset.pattern.permute.xlu0 0
    %40 = vperm.xlu0 %39, %v36
    %v41 = vpop.permute.xlu0 %40
    %v43 = vlaneseq
    %v44 = vshrl.u32 %v43, 7
    %v45 = vsub.s32 0, %v44
    %v46 = vrot.slane %v37, %v45
    %v47 = vmul.f32 %v41, %v46
    %48 = vset.pattern.permute.xlu0 1
    %49 = vperm.xlu0 %48, %v36
    %v50 = vpop.permute.xlu0 %49
    %v52 = vlaneseq
    %v53 = vshrl.u32 %v52, 7
    %v54 = vsub.s32 1, %v53
    %v55 = vrot.slane %v37, %v54
    %v56 = vmul.f32 %v50, %v55
    %v57 = vadd.f32 %v47, %v56
    %v58 = vlaneseq
    %v59 = vshrl.u32 %v58, 7
    %v60 = vsub.s32 2, %v59
    %v61 = vrot.slane %v37, %v60
    %v62 = vadd.f32 %v57, %v61
    %vm63 = vcmask 17408
    %64 = vst.msk [vmem:[#allocation7] sm:$0x3] %vm63, %v62
    %65 = vst.msk [vmem:[#allocation7 + $0x2] sm:$0x3] %vm63, %v62
    %66 = vst.msk [vmem:[#allocation7 + $0x4] sm:$0x3] %vm63, %v62
    // Predicated region
    $region18: #{forward.1} parent=1 // pred_check
      _
    $region19: #{forward.1} parent=1 // pred_check_branch
      %68 = sbr.rel (0) target = $region21
    $region20: #{forward.1} parent=1 // pred_region
      %s70 = ssub.s32 96, 96
      %71 = vsyncadd [#allocation4], %s70
      %s72 = sshll.u32 [#allocation7], 4
      %s73 = int_to_ptr.vmem [resolvable:$true] %s72
      %78 = dma.vmem_to_hbm [thread:$0]  %s73, 96, %s2, [#allocation4], 32, 32, 2
    $region21: #{forward.1} parent=1 // pred_fallthru
      _
    // Predicated region
    $region22: #{forward.1} parent=1 // pred_check
      _
    $region23: #{forward.1} parent=1 // pred_check_branch
      %80 = sbr.rel (0) target = $region25
    $region24: #{forward.1} parent=1 // pred_region
      %81 = dma.done [#allocation4], 96
    $region25: #{forward.1} parent=1 // pred_fallthru
      _
    %82 = vsyncpa [#allocation3], 1
    %83 = vsyncpa [#allocation6], 1
    %84 = vsyncpa [#allocation4], 1

</llo_original>
